<compile_context>
chip_gen: v7x
topology: tpu7x:2x2x1
jax: 0.10.0
libtpu: 0.0.40
codegen_flags: <defaults>
</compile_context>

<pallas_src>
import jax
import jax.numpy as jnp
from jax.experimental import pallas as pl
from jax.experimental.pallas import tpu as pltpu

LANE = 128


def _detect_v7x() -> bool:
    try:
        kind = jax.devices()[0].device_kind.lower()
        return "v7" in kind
    except Exception:
        return False


_IS_V7X = _detect_v7x()
# Per-block byte cap in the *native* dtype. Double-buffered in+out at the cap is
# 4x this value, comfortably under the scoped-VMEM limit we request below.
_BLOCK_BYTES_CAP = (4 << 20) if _IS_V7X else (2 << 20)
_VMEM_LIMIT_BYTES = 32 * 1024 * 1024  # safe on v5e/v6e (128 MiB phys) and v7x (64 MiB phys)


def _tanh_kernel(x_ref, o_ref):
    # Compute in f32 (matches tanhf in the CUDA reference); cast back so only
    # native-width data touches HBM.
    o_ref[...] = jnp.tanh(x_ref[...].astype(jnp.float32)).astype(o_ref.dtype)


def _choose_tile_rows(rows: int, itemsize: int) -> int:
    """Pick the block row count (lane dim is fixed at 128)."""
    # Packed-sublane multiple: 8 for f32, 16 for bf16/f16, 32 for int8/fp8.
    sub = max(8, 32 // itemsize)
    if rows <= 2 * sub:
        return rows  # single tiny block; full-dim block shape is always legal
    cap_rows = max(sub, (_BLOCK_BYTES_CAP // (LANE * itemsize)) // sub * sub)
    nblocks = -(-rows // cap_rows)
    nblocks = max(nblocks, 2)            # >=2 blocks so the parallel axis can shard across TCs
    if nblocks <= 6 and nblocks % 2 == 1:
        nblocks += 1                     # keep small grids balanced on v7x's two TensorCores
    tr = -(-rows // nblocks)
    tr = -(-tr // sub) * sub             # round up to the packed sublane multiple
    return min(tr, rows)


@jax.jit
def pallas_tanh(x: jax.Array) -> jax.Array:
    """Elementwise tanh via Pallas. Any shape; computes in float32 like the CUDA
    reference while keeping HBM I/O in the native dtype. (Integer / f64 inputs are
    not meaningful for the tanhf reference and are simply cast through f32.)"""
    orig_shape = x.shape
    dtype = x.dtype
    n = x.size
    if n == 0:
        return x
    itemsize = jnp.dtype(dtype).itemsize

    flat = jnp.ravel(x)  # metadata-only for contiguous/default-layout inputs
    n_body = (n // LANE) * LANE
    tail = n - n_body

    parts = []
    if n_body:
        rows = n_body // LANE
        tr = _choose_tile_rows(rows, itemsize)
        x2d = flat[:n_body].reshape(rows, LANE)
        out2d = pl.pallas_call(
            _tanh_kernel,
            out_shape=jax.ShapeDtypeStruct((rows, LANE), dtype),
            grid_spec=pltpu.PrefetchScalarGridSpec(
                num_scalar_prefetch=0,
                grid=(pl.cdiv(rows, tr),),      # boundary block masked by Pallas
                in_specs=[pl.BlockSpec((tr, LANE), lambda i: (i, 0))],
                out_specs=pl.BlockSpec((tr, LANE), lambda i: (i, 0)),
            ),
            compiler_params=pltpu.CompilerParams(
                dimension_semantics=("parallel",),
                vmem_limit_bytes=_VMEM_LIMIT_BYTES,
            ),
            cost_estimate=pl.CostEstimate(
                flops=0,
                transcendentals=n_body,
                bytes_accessed=2 * n_body * itemsize,
            ),
        )(x2d)
        parts.append(out2d.reshape(-1))
    if tail:
        # <128-element ragged tail: a full Pallas call is pure overhead here,
        # handle it with plain XLA tanh and stitch.
        tail_out = jnp.tanh(flat[n_body:].astype(jnp.float32)).astype(dtype)
        parts.append(tail_out)

    out = parts[0] if len(parts) == 1 else jnp.concatenate(parts)
    return out.reshape(orig_shape)


if __name__ == "__main__":
    key = jax.random.PRNGKey(0)

    # Shape implied by the module's forward (NCHW-ish elementwise input).
    x = jax.random.normal(key, (2, 4, 16, 16), dtype=jnp.float32)
    y = pallas_tanh(x)
    jax.block_until_ready(y)
    ref = jnp.tanh(x)
    assert y.shape == x.shape and y.dtype == x.dtype
    assert jnp.max(jnp.abs(y - ref)) < 1e-6

    # Multi-block path.
    x2 = jax.random.normal(jax.random.PRNGKey(1), (64, 64, 8), dtype=jnp.float32)
    y2 = pallas_tanh(x2)
    jax.block_until_ready(y2)
    assert jnp.max(jnp.abs(y2 - jnp.tanh(x2))) < 1e-6

    # Ragged (numel % 128 != 0) path: 655 = 5*128 + 15 tail.
    x3 = jax.random.normal(jax.random.PRNGKey(2), (5, 131), dtype=jnp.float32)
    y3 = pallas_tanh(x3)
    jax.block_until_ready(y3)
    assert jnp.max(jnp.abs(y3 - jnp.tanh(x3))) < 1e-6

    print("KERNEL_OK")
</pallas_src>

<mosaic_0001>
module attributes {stable_mosaic.version = 11 : i64} {
  func.func @_tanh_kernel(%arg0: i32, %arg1: memref<16x128xf32, #tpu.memory_space<vmem>>, %arg2: memref<16x128xf32, #tpu.memory_space<vmem>>) attributes {dimension_semantics = [#tpu.dimension_semantics<parallel>], iteration_bounds = array<i64: 1>, scalar_prefetch = 0 : i64, scratch_operands = 0 : i64, tpu.core_type = #tpu.core_type<tc>, window_params = [{transform_indices = @transform_0, window_bounds = array<i64: 16, 128>}, {transform_indices = @transform_1, window_bounds = array<i64: 16, 128>}]} {
    %c0 = arith.constant 0 : index
    %c0_0 = arith.constant 0 : index
    %0 = vector.load %arg1[%c0, %c0_0] : memref<16x128xf32, #tpu.memory_space<vmem>>, vector<16x128xf32>
    %1 = math.tanh %0 : vector<16x128xf32>
    %c0_1 = arith.constant 0 : index
    %c0_2 = arith.constant 0 : index
    %2 = vector.load %arg2[%c0_1, %c0_2] : memref<16x128xf32, #tpu.memory_space<vmem>>, vector<16x128xf32>
    tpu.vector_store %arg2[%c0_1, %c0_2], %1 {strides = array<i32>} : memref<16x128xf32, #tpu.memory_space<vmem>>, vector<16x128xf32>,
    return
  }
  func.func @transform_0(%arg0: i32) -> (i32, i32) {
    %c0_i32 = arith.constant 0 : i32
    %c0_i32_0 = arith.constant 0 : i32
    return %arg0, %c0_i32 : i32, i32
  }
  func.func @transform_1(%arg0: i32) -> (i32, i32) {
    %c0_i32 = arith.constant 0 : i32
    %c0_i32_0 = arith.constant 0 : i32
    return %arg0, %c0_i32 : i32, i32
  }
}

</mosaic_0001>

<llo_original>
// kernel: pallas_tanh.1
$region0: #{pallas_tanh.1}
  #allocation0 [shape = 'u32[]', space=smem, size = 0x4, offset = 0x4, fixed_abs, tag = 'smem constant byte address 0x4 - core index']
  #allocation1 [shape = 'u32[144,128]{1,0:T(1,128)}', space=vmem, size = 0x12000, scoped, tag = 'internal scratch']
  %s0 = inlined_call_operand.vmem [shape: f32[16,128], index: 0, kind: input, shape index: {}]
  %s1 = inlined_call_operand.vmem [shape: f32[16,128], index: 1, kind: output, shape index: {}]
  %s2 = sld [smem:[#allocation0]]
  $region14: #{pallas_tanh.1} parent=0
    _
  %s4 = ssub.s32 1, %s2
  %s5 = scalar_select 0, %s4, %s2
  // Predicated region
  $region2: #{pallas_tanh.1} parent=0 // pred_check
    _
  $region3: #{pallas_tanh.1} parent=0 // pred_check_branch
    %7 = sbr.rel (0) target = $region5
  $region4: #{pallas_tanh.1} parent=0 // pred_region
    _
  $region5: #{pallas_tanh.1} parent=0 // pred_fallthru
    _
  %v8 = vld [vmem:[%s0] sm:$0xff]
  %v9 = vld [vmem:[%s0 + $0x8] sm:$0xff]
  %v10 = vtanh.pop %v8
  %v11 = vtanh.pop %v9
  %12 = vst [vmem:[%s1] sm:$0xff] %v10
  %13 = vst [vmem:[%s1 + $0x8] sm:$0xff] %v11
  // Predicated region
  $region6: #{pallas_tanh.1} parent=0 // pred_check
    _
  $region7: #{pallas_tanh.1} parent=0 // pred_check_branch
    %15 = sbr.rel (0) target = $region9
  $region8: #{pallas_tanh.1} parent=0 // pred_region
    _
  $region9: #{pallas_tanh.1} parent=0 // pred_fallthru
    _
  // Predicated region
  $region10: #{pallas_tanh.1} parent=0 // pred_check
    _
  $region11: #{pallas_tanh.1} parent=0 // pred_check_branch
    %17 = sbr.rel (0) target = $region13
  $region12: #{pallas_tanh.1} parent=0 // pred_region
    _
  $region13: #{pallas_tanh.1} parent=0 // pred_fallthru
    _

</llo_original>
